<compile_context>
chip_gen: v5e
topology: v5e:2x2
jax: 0.10.0
libtpu: 0.0.40
codegen_flags: <defaults>
</compile_context>

<pallas_src>
import functools

import jax
import jax.numpy as jnp
from jax.experimental import pallas as pl
from jax.experimental.pallas import tpu as pltpu


# ----------------------------------------------------------------------------
# Pallas kernel: the entire NeXtVLAD forward for one batch element.
# ----------------------------------------------------------------------------
def _nextvlad_kernel(M, G, K, GS,
                     x_ref, w0_ref, b0_ref, wc_ref, bc_ref,
                     cw2t_ref, bn0s_ref, bn0o_ref, bn1_ref, out_ref):
    GK = G * K
    x = x_ref[0]                                                     # (M, dim) bf16

    # fc0: x_dot = x @ W0 + b0  (bf16 MXU inputs, f32 accumulation)
    x_dot = jnp.dot(x, w0_ref[...],
                    preferred_element_type=jnp.float32) + b0_ref[...]      # (M, LD) f32
    x_dot_bf = x_dot.astype(jnp.bfloat16)

    # Fused fc_gk | fc_g: one matmul, slice gate logits out of the result.
    comb = jnp.dot(x_dot_bf, wc_ref[...],
                   preferred_element_type=jnp.float32) + bc_ref[...]       # (M, GK+G)

    # bn0 (eval mode, per-frame scale/offset) applies only to the fc_gk part.
    wgkx = comb[:, :GK] * bn0s_ref[...] + bn0o_ref[...]                    # (M, GK)
    alpha_g = jax.nn.sigmoid(comb[:, GK:GK + G])                           # (M, G)

    # ---- Phase 1: elementwise softmax + gate for all groups (no matmuls). --
    # Equivalent to reshape (M, G*K) -> (M*G, K) + softmax over K.
    acts_bf = []
    actall = jnp.zeros((M, K), jnp.float32)
    for g in range(G):
        s = wgkx[:, g * K:(g + 1) * K]                               # (M, K)
        s = s - jnp.max(s, axis=-1, keepdims=True)
        p = jnp.exp(s)
        inv_den = pl.reciprocal(jnp.sum(p, axis=-1, keepdims=True), approx=True)
        act = p * inv_den * alpha_g[:, g:g + 1]                      # (M, K) f32
        actall = actall + act
        acts_bf.append(act.astype(jnp.bfloat16))

    # ---- Phase 2: matmuls only — MXU streams back to back. ----------------
    # vlad_t[k, d] = sum_m act_g[m, k] * x_dot[m, g*GS + d], summed over g.
    vlad_t = jnp.zeros((K, GS), jnp.float32)
    for g in range(G):
        xt_bf = x_dot_bf[:, g * GS:(g + 1) * GS]                     # (M, GS) bf16
        vlad_t = vlad_t + jax.lax.dot_general(
            acts_bf[g], xt_bf, (((0,), (0,)), ((), ())),
            preferred_element_type=jnp.float32)                      # (K, GS)

    # a_sum on the MXU: a_col[k] = sum_{m,g} act[m,g,k] = (actall^T @ 1)[k].
    ones_m = jnp.ones((M, 8), jnp.bfloat16)
    a_col = jax.lax.dot_general(
        actall.astype(jnp.bfloat16), ones_m, (((0,), (0,)), ((), ())),
        preferred_element_type=jnp.float32)[:, :1]                   # (K, 1)

    vlad_t = vlad_t - a_col * cw2t_ref[...]                          # (K, GS)

    # F.normalize(vlad, p=1, dim=1): L1 norm over group_size (lane axis here).
    norm = jnp.maximum(jnp.sum(jnp.abs(vlad_t), axis=-1, keepdims=True), 1e-12)
    vlad_t = vlad_t * pl.reciprocal(norm, approx=True)

    # bn1 (single channel, eval mode) folded to scalar scale/offset in SMEM.
    out_ref[0] = vlad_t * bn1_ref[0] + bn1_ref[1]


# ----------------------------------------------------------------------------
# Wrapper: parameter plumbing + pallas_call
# ----------------------------------------------------------------------------
def nextvlad_forward(x, params, *, G, K):
    B, M, dim = x.shape
    w0, b0 = params["w0"], params["b0"]
    wgk, bgk = params["wgk"], params["bgk"]
    wg, bg = params["wg"], params["bg"]
    cw2 = params["cw2"]                       # (GS, K)
    LD = w0.shape[1]                          # lamb * dim
    GS = LD // G                              # group_size
    GKG = G * K + G                           # fused fc_gk | fc_g output width

    eps = 1e-5
    bn0_scale = params["bn0_gamma"] / jnp.sqrt(params["bn0_var"] + eps)      # (M,)
    bn0_offset = params["bn0_beta"] - params["bn0_mean"] * bn0_scale         # (M,)
    bn1_scale = params["bn1_gamma"] / jnp.sqrt(params["bn1_var"] + eps)      # ()
    bn1_offset = params["bn1_beta"] - params["bn1_mean"] * bn1_scale         # ()
    bn1_params = jnp.stack([bn1_scale, bn1_offset]).astype(jnp.float32)      # (2,)

    # Fuse the gate matmul into fc_gk; pre-transpose cluster_weights2.
    wc = jnp.concatenate([wgk, wg], axis=1)           # (LD, G*K + G)
    bc = jnp.concatenate([bgk, bg], axis=0)           # (G*K + G,)
    cw2_t = jnp.transpose(cw2)                        # (K, GS)

    kernel = functools.partial(_nextvlad_kernel, M, G, K, GS)

    out_t = pl.pallas_call(
        kernel,
        out_shape=jax.ShapeDtypeStruct((B, K, GS), jnp.float32),
        grid=(B,),
        in_specs=[
            pl.BlockSpec((1, M, dim), lambda b: (b, 0, 0)),           # x (bf16)
            pl.BlockSpec((dim, LD), lambda b: (0, 0)),                # w0 (bf16)
            pl.BlockSpec((1, LD), lambda b: (0, 0)),                  # b0
            pl.BlockSpec((LD, GKG), lambda b: (0, 0)),                # [wgk|wg] (bf16)
            pl.BlockSpec((1, GKG), lambda b: (0, 0)),                 # [bgk|bg]
            pl.BlockSpec((K, GS), lambda b: (0, 0)),                  # cw2^T
            pl.BlockSpec((M, 1), lambda b: (0, 0)),                   # bn0 scale
            pl.BlockSpec((M, 1), lambda b: (0, 0)),                   # bn0 offset
            pl.BlockSpec(memory_space=pltpu.MemorySpace.SMEM),        # bn1 [scale, off]
        ],
        out_specs=pl.BlockSpec((1, K, GS), lambda b: (b, 0, 0)),
        compiler_params=pltpu.CompilerParams(
            dimension_semantics=("parallel",),
            vmem_limit_bytes=32 * 1024 * 1024),
    )(
        x.astype(jnp.bfloat16),
        w0.astype(jnp.bfloat16), b0.reshape(1, LD).astype(jnp.float32),
        wc.astype(jnp.bfloat16), bc.reshape(1, GKG).astype(jnp.float32),
        cw2_t.astype(jnp.float32),
        bn0_scale.reshape(M, 1).astype(jnp.float32),
        bn0_offset.reshape(M, 1).astype(jnp.float32),
        bn1_params,
    )
    # Kernel emits (B, K, GS); torch flattens (B, GS, K) row-major, i.e.
    # group_size-major / K-minor — transpose back + flatten as plain JAX glue.
    return jnp.swapaxes(out_t, 1, 2).reshape(B, GS * K)


# ----------------------------------------------------------------------------
# Pure-JAX reference (mirrors the PyTorch code path, eval-mode BN, f32)
# ----------------------------------------------------------------------------
def nextvlad_reference(x, params, *, G, K):
    B, M, dim = x.shape
    w0, b0 = params["w0"], params["b0"]
    wgk, bgk = params["wgk"], params["bgk"]
    wg, bg = params["wg"], params["bg"]
    cw2 = params["cw2"]
    LD = w0.shape[1]
    GS = LD // G
    eps = 1e-5
    bn0_scale = params["bn0_gamma"] / jnp.sqrt(params["bn0_var"] + eps)
    bn0_offset = params["bn0_beta"] - params["bn0_mean"] * bn0_scale
    bn1_scale = params["bn1_gamma"] / jnp.sqrt(params["bn1_var"] + eps)
    bn1_offset = params["bn1_beta"] - params["bn1_mean"] * bn1_scale

    x_dot = x @ w0 + b0                                              # (B, M, LD)
    x_tilde = x_dot.reshape(B, M, G, GS)
    WgkX = x_dot @ wgk + bgk                                         # (B, M, G*K)
    WgkX = WgkX * bn0_scale[None, :, None] + bn0_offset[None, :, None]
    WgkX = WgkX.reshape(B, M * G, K)
    alpha_gk = jax.nn.softmax(WgkX, axis=-1)
    alpha_g = jax.nn.sigmoid(x_dot @ wg + bg).reshape(B, M * G, 1)
    activation = alpha_gk * alpha_g                                  # (B, M*G, K)
    a_sum = activation.sum(axis=-2, keepdims=True)                   # (B, 1, K)
    a = a_sum * cw2[None]                                            # (B, GS, K)
    vlad = jnp.einsum("bkm,bmd->bkd",
                      jnp.transpose(activation, (0, 2, 1)),
                      x_tilde.reshape(B, M * G, GS))                 # (B, K, GS)
    vlad = jnp.transpose(vlad, (0, 2, 1)) - a                        # (B, GS, K)
    norm = jnp.maximum(jnp.sum(jnp.abs(vlad), axis=1, keepdims=True), 1e-12)
    vlad = vlad / norm
    vlad = vlad.reshape(B, 1, K * GS)
    vlad = vlad * bn1_scale + bn1_offset
    return vlad.reshape(B, K * GS)


# ----------------------------------------------------------------------------
# Deterministic parameter construction (synthetic, no checkpoint load)
# ----------------------------------------------------------------------------
def make_params(key, *, dim, lamb, G, K, M):
    LD = lamb * dim
    GS = LD // G
    ks = jax.random.split(key, 12)
    p = {
        "w0":  0.05 * jax.random.normal(ks[0], (dim, LD), jnp.float32),
        "b0":  0.05 * jax.random.normal(ks[1], (LD,), jnp.float32),
        "wgk": 0.05 * jax.random.normal(ks[2], (LD, G * K), jnp.float32),
        "bgk": 0.05 * jax.random.normal(ks[3], (G * K,), jnp.float32),
        "wg":  0.05 * jax.random.normal(ks[4], (LD, G), jnp.float32),
        "bg":  0.05 * jax.random.normal(ks[5], (G,), jnp.float32),
        # torch.rand(1, group_size, K) -> uniform [0, 1); leading 1 squeezed.
        "cw2": jax.random.uniform(ks[6], (GS, K), jnp.float32),
        "bn0_gamma": 1.0 + 0.1 * jax.random.normal(ks[7], (M,), jnp.float32),
        "bn0_beta":  0.1 * jax.random.normal(ks[8], (M,), jnp.float32),
        "bn0_mean":  0.1 * jax.random.normal(ks[9], (M,), jnp.float32),
        "bn0_var":   jax.random.uniform(ks[10], (M,), jnp.float32, 0.5, 1.5),
        "bn1_gamma": jnp.float32(1.1),
        "bn1_beta":  jnp.float32(0.05),
        "bn1_mean":  jnp.float32(0.02),
        "bn1_var":   jnp.float32(0.9),
    }
    _ = ks[11]
    return p


if __name__ == "__main__":
    # Small, self-consistent configuration (analogue of dim=1024, K=64, G=8,
    # lamb=2, max_frames=300 at toy scale).
    dim, lamb, G, K, M, B = 32, 2, 4, 8, 8, 2

    key = jax.random.PRNGKey(0)
    kx, kp = jax.random.split(key)
    x = jax.random.normal(kx, (B, M, dim), jnp.float32)
    params = make_params(kp, dim=dim, lamb=lamb, G=G, K=K, M=M)

    out = nextvlad_forward(x, params, G=G, K=K)
    out = jax.block_until_ready(out)

    ref = nextvlad_reference(x, params, G=G, K=K)
    assert out.shape == (B, K * (lamb * dim // G)), out.shape
    # bf16 matmul inputs + approx reciprocals loosen the tolerance vs. the
    # pure-f32 reference (accumulation / softmax / norm are still f32).
    assert jnp.allclose(out, ref, atol=2e-2, rtol=2e-2), (
        float(jnp.max(jnp.abs(out - ref))))

    print("KERNEL_OK")
</pallas_src>

<mosaic_0001>
module attributes {stable_mosaic.version = 11 : i64} {
  func.func @_nextvlad_kernel(%arg0: i32, %arg1: memref<1x8x32xbf16, #tpu.memory_space<vmem>>, %arg2: memref<32x64xbf16, #tpu.memory_space<vmem>>, %arg3: memref<1x64xf32, #tpu.memory_space<vmem>>, %arg4: memref<64x36xbf16, #tpu.memory_space<vmem>>, %arg5: memref<1x36xf32, #tpu.memory_space<vmem>>, %arg6: memref<8x16xf32, #tpu.memory_space<vmem>>, %arg7: memref<8x1xf32, #tpu.memory_space<vmem>>, %arg8: memref<8x1xf32, #tpu.memory_space<vmem>>, %arg9: memref<2xf32, #tpu.memory_space<smem>>, %arg10: memref<1x8x16xf32, #tpu.memory_space<vmem>>) attributes {dimension_semantics = [#tpu.dimension_semantics<parallel>], iteration_bounds = array<i64: 2>, scalar_prefetch = 0 : i64, scratch_operands = 0 : i64, tpu.core_type = #tpu.core_type<tc>, window_params = [{transform_indices = @transform_0, window_bounds = array<i64: 1, 8, 32>}, {pipeline_mode = #tpu.pipeline_mode<synchronous>, transform_indices = @transform_1, window_bounds = array<i64: 32, 64>}, {pipeline_mode = #tpu.pipeline_mode<synchronous>, transform_indices = @transform_2, window_bounds = array<i64: 1, 64>}, {pipeline_mode = #tpu.pipeline_mode<synchronous>, transform_indices = @transform_3, window_bounds = array<i64: 64, 36>}, {pipeline_mode = #tpu.pipeline_mode<synchronous>, transform_indices = @transform_4, window_bounds = array<i64: 1, 36>}, {pipeline_mode = #tpu.pipeline_mode<synchronous>, transform_indices = @transform_5, window_bounds = array<i64: 8, 16>}, {pipeline_mode = #tpu.pipeline_mode<synchronous>, transform_indices = @transform_6, window_bounds = array<i64: 8, 1>}, {pipeline_mode = #tpu.pipeline_mode<synchronous>, transform_indices = @transform_7, window_bounds = array<i64: 8, 1>}, {transform_indices = @transform_8, window_bounds = array<i64: 2>}, {transform_indices = @transform_9, window_bounds = array<i64: 1, 8, 16>}]} {
    %c0 = arith.constant 0 : index
    %c0_0 = arith.constant 0 : index
    %c0_1 = arith.constant 0 : index
    %0 = vector.load %arg1[%c0, %c0_0, %c0_1] : memref<1x8x32xbf16, #tpu.memory_space<vmem>>, vector<1x8x32xbf16>
    %1 = vector.shape_cast %0 : vector<1x8x32xbf16> to vector<8x32xbf16>
    %c0_2 = arith.constant 0 : index
    %c0_3 = arith.constant 0 : index
    %2 = vector.load %arg2[%c0_2, %c0_3] : memref<32x64xbf16, #tpu.memory_space<vmem>>, vector<32x64xbf16>
    %cst = arith.constant dense<0.000000e+00> : vector<8x64xf32>
    %3 = tpu.matmul %1, %2, %cst {dimension_numbers = #tpu.dot_dimension_numbers<[1], [0], [0], [1], [0, 0, 1, 1], [], []>} : vector<8x32xbf16>, vector<32x64xbf16>, vector<8x64xf32> -> vector<8x64xf32>
    %c0_4 = arith.constant 0 : index
    %c0_5 = arith.constant 0 : index
    %4 = vector.load %arg3[%c0_4, %c0_5] : memref<1x64xf32, #tpu.memory_space<vmem>>, vector<1x64xf32>
    %5 = vector.broadcast %4 : vector<1x64xf32> to vector<8x64xf32>
    %6 = arith.addf %3, %5 : vector<8x64xf32>
    %7 = arith.truncf %6 : vector<8x64xf32> to vector<8x64xbf16>
    %c0_6 = arith.constant 0 : index
    %c0_7 = arith.constant 0 : index
    %8 = vector.load %arg4[%c0_6, %c0_7] : memref<64x36xbf16, #tpu.memory_space<vmem>>, vector<64x36xbf16>
    %cst_8 = arith.constant dense<0.000000e+00> : vector<8x36xf32>
    %9 = tpu.matmul %7, %8, %cst_8 {dimension_numbers = #tpu.dot_dimension_numbers<[1], [0], [0], [1], [0, 0, 1, 1], [], []>} : vector<8x64xbf16>, vector<64x36xbf16>, vector<8x36xf32> -> vector<8x36xf32>
    %c0_9 = arith.constant 0 : index
    %c0_10 = arith.constant 0 : index
    %10 = vector.load %arg5[%c0_9, %c0_10] : memref<1x36xf32, #tpu.memory_space<vmem>>, vector<1x36xf32>
    %11 = vector.broadcast %10 : vector<1x36xf32> to vector<8x36xf32>
    %12 = arith.addf %9, %11 : vector<8x36xf32>
    %13 = vector.extract_strided_slice %12 {offsets = [0, 0], sizes = [8, 32], strides = [1, 1]} : vector<8x36xf32> to vector<8x32xf32>
    %c0_11 = arith.constant 0 : index
    %c0_12 = arith.constant 0 : index
    %14 = vector.load %arg7[%c0_11, %c0_12] : memref<8x1xf32, #tpu.memory_space<vmem>>, vector<8x1xf32>
    %15 = vector.broadcast %14 : vector<8x1xf32> to vector<8x32xf32>
    %16 = arith.mulf %13, %15 : vector<8x32xf32>
    %c0_13 = arith.constant 0 : index
    %c0_14 = arith.constant 0 : index
    %17 = vector.load %arg8[%c0_13, %c0_14] : memref<8x1xf32, #tpu.memory_space<vmem>>, vector<8x1xf32>
    %18 = vector.broadcast %17 : vector<8x1xf32> to vector<8x32xf32>
    %19 = arith.addf %16, %18 : vector<8x32xf32>
    %20 = vector.extract_strided_slice %12 {offsets = [0, 32], sizes = [8, 4], strides = [1, 1]} : vector<8x36xf32> to vector<8x4xf32>
    %21 = arith.negf %20 : vector<8x4xf32>
    %22 = math.exp %21 : vector<8x4xf32>
    %cst_15 = arith.constant 1.000000e+00 : f32
    %23 = vector.broadcast %cst_15 : f32 to vector<8x4xf32>
    %24 = arith.addf %23, %22 : vector<8x4xf32>
    %25 = arith.divf %23, %24 : vector<8x4xf32>
    %cst_16 = arith.constant 0.000000e+00 : f32
    %26 = vector.broadcast %cst_16 : f32 to vector<8x8xf32>
    %27 = vector.extract_strided_slice %19 {offsets = [0, 0], sizes = [8, 8], strides = [1, 1]} : vector<8x32xf32> to vector<8x8xf32>
    %cst_17 = arith.constant dense<0xFF800000> : vector<8xf32>
    %28 = vector.multi_reduction <maximumf>, %27, %cst_17 [1] : vector<8x8xf32> to vector<8xf32>
    %29 = vector.shape_cast %28 : vector<8xf32> to vector<8x1xf32>
    %30 = vector.broadcast %29 : vector<8x1xf32> to vector<8x8xf32>
    %31 = arith.subf %27, %30 : vector<8x8xf32>
    %32 = math.exp %31 : vector<8x8xf32>
    %cst_18 = arith.constant dense<0.000000e+00> : vector<8xf32>
    %33 = vector.multi_reduction <add>, %32, %cst_18 [1] : vector<8x8xf32> to vector<8xf32>
    %34 = vector.shape_cast %33 : vector<8xf32> to vector<8x1xf32>
    %35 = tpu.reciprocal %34 {approx = true} : vector<8x1xf32> -> vector<8x1xf32>
    %36 = vector.broadcast %35 : vector<8x1xf32> to vector<8x8xf32>
    %37 = arith.mulf %32, %36 : vector<8x8xf32>
    %38 = vector.extract_strided_slice %25 {offsets = [0, 0], sizes = [8, 1], strides = [1, 1]} : vector<8x4xf32> to vector<8x1xf32>
    %39 = vector.broadcast %38 : vector<8x1xf32> to vector<8x8xf32>
    %40 = arith.mulf %37, %39 : vector<8x8xf32>
    %41 = arith.addf %26, %40 : vector<8x8xf32>
    %42 = arith.truncf %40 : vector<8x8xf32> to vector<8x8xbf16>
    %43 = vector.extract_strided_slice %19 {offsets = [0, 8], sizes = [8, 8], strides = [1, 1]} : vector<8x32xf32> to vector<8x8xf32>
    %cst_19 = arith.constant dense<0xFF800000> : vector<8xf32>
    %44 = vector.multi_reduction <maximumf>, %43, %cst_19 [1] : vector<8x8xf32> to vector<8xf32>
    %45 = vector.shape_cast %44 : vector<8xf32> to vector<8x1xf32>
    %46 = vector.broadcast %45 : vector<8x1xf32> to vector<8x8xf32>
    %47 = arith.subf %43, %46 : vector<8x8xf32>
    %48 = math.exp %47 : vector<8x8xf32>
    %cst_20 = arith.constant dense<0.000000e+00> : vector<8xf32>
    %49 = vector.multi_reduction <add>, %48, %cst_20 [1] : vector<8x8xf32> to vector<8xf32>
    %50 = vector.shape_cast %49 : vector<8xf32> to vector<8x1xf32>
    %51 = tpu.reciprocal %50 {approx = true} : vector<8x1xf32> -> vector<8x1xf32>
    %52 = vector.broadcast %51 : vector<8x1xf32> to vector<8x8xf32>
    %53 = arith.mulf %48, %52 : vector<8x8xf32>
    %54 = vector.extract_strided_slice %25 {offsets = [0, 1], sizes = [8, 1], strides = [1, 1]} : vector<8x4xf32> to vector<8x1xf32>
    %55 = vector.broadcast %54 : vector<8x1xf32> to vector<8x8xf32>
    %56 = arith.mulf %53, %55 : vector<8x8xf32>
    %57 = arith.addf %41, %56 : vector<8x8xf32>
    %58 = arith.truncf %56 : vector<8x8xf32> to vector<8x8xbf16>
    %59 = vector.extract_strided_slice %19 {offsets = [0, 16], sizes = [8, 8], strides = [1, 1]} : vector<8x32xf32> to vector<8x8xf32>
    %cst_21 = arith.constant dense<0xFF800000> : vector<8xf32>
    %60 = vector.multi_reduction <maximumf>, %59, %cst_21 [1] : vector<8x8xf32> to vector<8xf32>
    %61 = vector.shape_cast %60 : vector<8xf32> to vector<8x1xf32>
    %62 = vector.broadcast %61 : vector<8x1xf32> to vector<8x8xf32>
    %63 = arith.subf %59, %62 : vector<8x8xf32>
    %64 = math.exp %63 : vector<8x8xf32>
    %cst_22 = arith.constant dense<0.000000e+00> : vector<8xf32>
    %65 = vector.multi_reduction <add>, %64, %cst_22 [1] : vector<8x8xf32> to vector<8xf32>
    %66 = vector.shape_cast %65 : vector<8xf32> to vector<8x1xf32>
    %67 = tpu.reciprocal %66 {approx = true} : vector<8x1xf32> -> vector<8x1xf32>
    %68 = vector.broadcast %67 : vector<8x1xf32> to vector<8x8xf32>
    %69 = arith.mulf %64, %68 : vector<8x8xf32>
    %70 = vector.extract_strided_slice %25 {offsets = [0, 2], sizes = [8, 1], strides = [1, 1]} : vector<8x4xf32> to vector<8x1xf32>
    %71 = vector.broadcast %70 : vector<8x1xf32> to vector<8x8xf32>
    %72 = arith.mulf %69, %71 : vector<8x8xf32>
    %73 = arith.addf %57, %72 : vector<8x8xf32>
    %74 = arith.truncf %72 : vector<8x8xf32> to vector<8x8xbf16>
    %75 = vector.extract_strided_slice %19 {offsets = [0, 24], sizes = [8, 8], strides = [1, 1]} : vector<8x32xf32> to vector<8x8xf32>
    %cst_23 = arith.constant dense<0xFF800000> : vector<8xf32>
    %76 = vector.multi_reduction <maximumf>, %75, %cst_23 [1] : vector<8x8xf32> to vector<8xf32>
    %77 = vector.shape_cast %76 : vector<8xf32> to vector<8x1xf32>
    %78 = vector.broadcast %77 : vector<8x1xf32> to vector<8x8xf32>
    %79 = arith.subf %75, %78 : vector<8x8xf32>
    %80 = math.exp %79 : vector<8x8xf32>
    %cst_24 = arith.constant dense<0.000000e+00> : vector<8xf32>
    %81 = vector.multi_reduction <add>, %80, %cst_24 [1] : vector<8x8xf32> to vector<8xf32>
    %82 = vector.shape_cast %81 : vector<8xf32> to vector<8x1xf32>
    %83 = tpu.reciprocal %82 {approx = true} : vector<8x1xf32> -> vector<8x1xf32>
    %84 = vector.broadcast %83 : vector<8x1xf32> to vector<8x8xf32>
    %85 = arith.mulf %80, %84 : vector<8x8xf32>
    %86 = vector.extract_strided_slice %25 {offsets = [0, 3], sizes = [8, 1], strides = [1, 1]} : vector<8x4xf32> to vector<8x1xf32>
    %87 = vector.broadcast %86 : vector<8x1xf32> to vector<8x8xf32>
    %88 = arith.mulf %85, %87 : vector<8x8xf32>
    %89 = arith.addf %73, %88 : vector<8x8xf32>
    %90 = arith.truncf %88 : vector<8x8xf32> to vector<8x8xbf16>
    %cst_25 = arith.constant 0.000000e+00 : f32
    %91 = vector.broadcast %cst_25 : f32 to vector<8x16xf32>
    %92 = vector.extract_strided_slice %7 {offsets = [0, 0], sizes = [8, 16], strides = [1, 1]} : vector<8x64xbf16> to vector<8x16xbf16>
    %cst_26 = arith.constant dense<0.000000e+00> : vector<8x16xf32>
    %93 = tpu.matmul %42, %92, %cst_26 {dimension_numbers = #tpu.dot_dimension_numbers<[0], [0], [1], [1], [0, 1, 1, 1], [], []>} : vector<8x8xbf16>, vector<8x16xbf16>, vector<8x16xf32> -> vector<8x16xf32>
    %94 = arith.addf %91, %93 : vector<8x16xf32>
    %95 = vector.extract_strided_slice %7 {offsets = [0, 16], sizes = [8, 16], strides = [1, 1]} : vector<8x64xbf16> to vector<8x16xbf16>
    %cst_27 = arith.constant dense<0.000000e+00> : vector<8x16xf32>
    %96 = tpu.matmul %58, %95, %cst_27 {dimension_numbers = #tpu.dot_dimension_numbers<[0], [0], [1], [1], [0, 1, 1, 1], [], []>} : vector<8x8xbf16>, vector<8x16xbf16>, vector<8x16xf32> -> vector<8x16xf32>
    %97 = arith.addf %94, %96 : vector<8x16xf32>
    %98 = vector.extract_strided_slice %7 {offsets = [0, 32], sizes = [8, 16], strides = [1, 1]} : vector<8x64xbf16> to vector<8x16xbf16>
    %cst_28 = arith.constant dense<0.000000e+00> : vector<8x16xf32>
    %99 = tpu.matmul %74, %98, %cst_28 {dimension_numbers = #tpu.dot_dimension_numbers<[0], [0], [1], [1], [0, 1, 1, 1], [], []>} : vector<8x8xbf16>, vector<8x16xbf16>, vector<8x16xf32> -> vector<8x16xf32>
    %100 = arith.addf %97, %99 : vector<8x16xf32>
    %101 = vector.extract_strided_slice %7 {offsets = [0, 48], sizes = [8, 16], strides = [1, 1]} : vector<8x64xbf16> to vector<8x16xbf16>
    %cst_29 = arith.constant dense<0.000000e+00> : vector<8x16xf32>
    %102 = tpu.matmul %90, %101, %cst_29 {dimension_numbers = #tpu.dot_dimension_numbers<[0], [0], [1], [1], [0, 1, 1, 1], [], []>} : vector<8x8xbf16>, vector<8x16xbf16>, vector<8x16xf32> -> vector<8x16xf32>
    %103 = arith.addf %100, %102 : vector<8x16xf32>
    %cst_30 = arith.constant 1.000000e+00 : bf16
    %104 = vector.broadcast %cst_30 : bf16 to vector<8x8xbf16>
    %105 = arith.truncf %89 : vector<8x8xf32> to vector<8x8xbf16>
    %cst_31 = arith.constant dense<0.000000e+00> : vector<8x8xf32>
    %106 = tpu.matmul %105, %104, %cst_31 {dimension_numbers = #tpu.dot_dimension_numbers<[0], [0], [1], [1], [0, 1, 1, 1], [], []>} : vector<8x8xbf16>, vector<8x8xbf16>, vector<8x8xf32> -> vector<8x8xf32>
    %107 = vector.extract_strided_slice %106 {offsets = [0, 0], sizes = [8, 1], strides = [1, 1]} : vector<8x8xf32> to vector<8x1xf32>
    %c0_32 = arith.constant 0 : index
    %c0_33 = arith.constant 0 : index
    %108 = vector.load %arg6[%c0_32, %c0_33] : memref<8x16xf32, #tpu.memory_space<vmem>>, vector<8x16xf32>
    %109 = vector.broadcast %107 : vector<8x1xf32> to vector<8x16xf32>
    %110 = arith.mulf %109, %108 : vector<8x16xf32>
    %111 = arith.subf %103, %110 : vector<8x16xf32>
    %112 = math.absf %111 : vector<8x16xf32>
    %cst_34 = arith.constant dense<0.000000e+00> : vector<8xf32>
    %113 = vector.multi_reduction <add>, %112, %cst_34 [1] : vector<8x16xf32> to vector<8xf32>
    %114 = vector.shape_cast %113 : vector<8xf32> to vector<8x1xf32>
    %cst_35 = arith.constant 9.99999996E-13 : f32
    %115 = vector.broadcast %cst_35 : f32 to vector<8x1xf32>
    %116 = arith.maximumf %114, %115 : vector<8x1xf32>
    %117 = tpu.reciprocal %116 {approx = true} : vector<8x1xf32> -> vector<8x1xf32>
    %118 = vector.broadcast %117 : vector<8x1xf32> to vector<8x16xf32>
    %119 = arith.mulf %111, %118 : vector<8x16xf32>
    %c0_36 = arith.constant 0 : index
    %120 = memref.load %arg9[%c0_36] : memref<2xf32, #tpu.memory_space<smem>>
    %121 = vector.broadcast %120 : f32 to vector<8x16xf32>
    %122 = arith.mulf %119, %121 : vector<8x16xf32>
    %c1 = arith.constant 1 : index
    %123 = memref.load %arg9[%c1] : memref<2xf32, #tpu.memory_space<smem>>
    %124 = vector.broadcast %123 : f32 to vector<8x16xf32>
    %125 = arith.addf %122, %124 : vector<8x16xf32>
    %c0_37 = arith.constant 0 : index
    %c0_38 = arith.constant 0 : index
    %c0_39 = arith.constant 0 : index
    %126 = vector.load %arg10[%c0_37, %c0_38, %c0_39] : memref<1x8x16xf32, #tpu.memory_space<vmem>>, vector<1x8x16xf32>
    %127 = vector.shape_cast %126 : vector<1x8x16xf32> to vector<8x16xf32>
    %128 = vector.shape_cast %125 : vector<8x16xf32> to vector<1x8x16xf32>
    tpu.vector_store %arg10[%c0_37, %c0_38, %c0_39], %128 {strides = array<i32>} : memref<1x8x16xf32, #tpu.memory_space<vmem>>, vector<1x8x16xf32>,
    return
  }
  func.func @transform_0(%arg0: i32) -> (i32, i32, i32) {
    %c0_i32 = arith.constant 0 : i32
    %c0_i32_0 = arith.constant 0 : i32
    %c0_i32_1 = arith.constant 0 : i32
    return %arg0, %c0_i32, %c0_i32_0 : i32, i32, i32
  }
  func.func @transform_1(%arg0: i32) -> (i32, i32) {
    %c0_i32 = arith.constant 0 : i32
    %c0_i32_0 = arith.constant 0 : i32
    %c0_i32_1 = arith.constant 0 : i32
    return %c0_i32, %c0_i32_0 : i32, i32
  }
  func.func @transform_2(%arg0: i32) -> (i32, i32) {
    %c0_i32 = arith.constant 0 : i32
    %c0_i32_0 = arith.constant 0 : i32
    %c0_i32_1 = arith.constant 0 : i32
    return %c0_i32, %c0_i32_0 : i32, i32
  }
  func.func @transform_3(%arg0: i32) -> (i32, i32) {
    %c0_i32 = arith.constant 0 : i32
    %c0_i32_0 = arith.constant 0 : i32
    %c0_i32_1 = arith.constant 0 : i32
    return %c0_i32, %c0_i32_0 : i32, i32
  }
  func.func @transform_4(%arg0: i32) -> (i32, i32) {
    %c0_i32 = arith.constant 0 : i32
    %c0_i32_0 = arith.constant 0 : i32
    %c0_i32_1 = arith.constant 0 : i32
    return %c0_i32, %c0_i32_0 : i32, i32
  }
  func.func @transform_5(%arg0: i32) -> (i32, i32) {
    %c0_i32 = arith.constant 0 : i32
    %c0_i32_0 = arith.constant 0 : i32
    %c0_i32_1 = arith.constant 0 : i32
    return %c0_i32, %c0_i32_0 : i32, i32
  }
  func.func @transform_6(%arg0: i32) -> (i32, i32) {
    %c0_i32 = arith.constant 0 : i32
    %c0_i32_0 = arith.constant 0 : i32
    %c0_i32_1 = arith.constant 0 : i32
    return %c0_i32, %c0_i32_0 : i32, i32
  }
  func.func @transform_7(%arg0: i32) -> (i32, i32) {
    %c0_i32 = arith.constant 0 : i32
    %c0_i32_0 = arith.constant 0 : i32
    %c0_i32_1 = arith.constant 0 : i32
    return %c0_i32, %c0_i32_0 : i32, i32
  }
  func.func @transform_8(%arg0: i32) -> i32 {
    %c0_i32 = arith.constant 0 : i32
    %c0_i32_0 = arith.constant 0 : i32
    return %c0_i32 : i32
  }
  func.func @transform_9(%arg0: i32) -> (i32, i32, i32) {
    %c0_i32 = arith.constant 0 : i32
    %c0_i32_0 = arith.constant 0 : i32
    %c0_i32_1 = arith.constant 0 : i32
    return %arg0, %c0_i32, %c0_i32_0 : i32, i32, i32
  }
}

</mosaic_0001>

<llo_original>
// kernel: tpu_custom_call.1
$region0: #{tpu_custom_call.1}
  #allocation0 [shape = 'u32[]', space=smem, size = 0x4, offset = 0x4, fixed_abs, tag = 'smem constant byte address 0x4 - core index']
  #allocation1 [shape = 'u32[72,128]{1,0:T(1,128)}', space=vmem, size = 0x9000, scoped, tag = 'internal scratch']
  %s0 = inlined_call_operand.vmem [shape: bf16[2,8,32], index: 0, kind: input, shape index: {}]
  %s1 = inlined_call_operand.vmem [shape: bf16[32,64], index: 1, kind: input, shape index: {}]
  %s2 = inlined_call_operand.vmem [shape: f32[1,64], index: 2, kind: input, shape index: {}]
  %s3 = inlined_call_operand.vmem [shape: bf16[64,36], index: 3, kind: input, shape index: {}]
  %s4 = inlined_call_operand.vmem [shape: f32[1,36], index: 4, kind: input, shape index: {}]
  %s5 = inlined_call_operand.vmem [shape: f32[8,16], index: 5, kind: input, shape index: {}]
  %s6 = inlined_call_operand.vmem [shape: f32[8,1], index: 6, kind: input, shape index: {}]
  %s7 = inlined_call_operand.vmem [shape: f32[8,1], index: 7, kind: input, shape index: {}]
  %s8 = inlined_call_operand.vmem [shape: f32[2], index: 8, kind: input, shape index: {}]
  %s9 = inlined_call_operand.hbm [shape: f32[2,8,16], index: 9, kind: output, shape index: {}]
  %s10 = sld [smem:[#allocation0]]
  $region73: #{tpu_custom_call.1} parent=0
    _
  %s12 = ssub.s32 1, %s10
  %s13 = scalar_select 0, %s12, %s10
  $region1: #{tpu_custom_call.1} parent=0
    #allocation2 [shape = 'u8[512]{0}', space=smem, size = 0x200, scoped, tag = 'input window, operand 8, single buffered']
    #allocation3 [shape = 's32[2]{0}', space=sflag, size = 0x8, scoped, tag = 'scoped memory for tpu_custom_call.1']
    #allocation4 [shape = 's32[2]{0}', space=sflag, size = 0x8, scoped, tag = 'scoped memory for tpu_custom_call.1']
    #allocation5 [shape = 'u8[8192]{0}', space=vmem, size = 0x2000, scoped, tag = 'output window, operand 0']
    %14 = vsyncpa [#allocation4], 0
    %15 = vsyncpa [#allocation3], 0
    %s16 = scalar_lea.sflag [#allocation3], 1
    %17 = vsyncpa %s16, 0
    loop: start=0, step=1, limit=4
    $region2: #{tpu_custom_call.1} parent=1 // loop_pre_header
      _
    $region3: #{tpu_custom_call.1} parent=1 // loop_header
      %s19 = sphi 0, %s23
      %p20 = scmp.ge.s32.totalorder %s19, 4
      %s29 = sphi 0, %s31
      %s32 = sphi 0, %s29
      %s33 = sphi 0, %s32
      %s49 = sphi 0, %s33
      %s53 = sphi 0, %s53
      %s55 = sphi 0, %s53
      %s56 = sphi 0, %s55
      %s70 = sphi 0, %s56
      %s74 = sphi 0, %s74
      %s76 = sphi 0, %s74
      %s77 = sphi 0, %s76
      %s91 = sphi 0, %s77
      %s95 = sphi 0, %s95
      %s97 = sphi 0, %s95
      %s98 = sphi 0, %s97
      %s112 = sphi 0, %s98
      %s116 = sphi 0, %s116
      %s118 = sphi 0, %s116
      %s119 = sphi 0, %s118
      %s133 = sphi 0, %s119
      %s137 = sphi 0, %s137
      %s139 = sphi 0, %s137
      %s140 = sphi 0, %s139
      %s154 = sphi 0, %s140
      %s158 = sphi 0, %s158
      %s160 = sphi 0, %s158
      %s161 = sphi 0, %s160
      %s175 = sphi 0, %s161
      %s179 = sphi 0, %s179
      %s181 = sphi 0, %s179
      %s182 = sphi 0, %s181
      %s196 = sphi 0, %s182
      %s200 = sphi 0, %s200
      %s202 = sphi 0, %s200
      %s203 = sphi 0, %s202
      %s217 = sphi 0, %s203
      %s223 = sphi 0, %s225
      %s226 = sphi 0, %s223
      %s227 = sphi 0, %s226
      %s243 = sphi 0, %s227
    $region4: #{tpu_custom_call.1} parent=1 // loop_header_branch
      %22 = sbr.rel (%p20) target = $region8
    $region5: #{tpu_custom_call.1} parent=1 // loop_body
      %s24 = ssub.s32 %s19, 1
      %s25 = ssub.s32 %s19, 2
      %s26 = sadd.s32 %s19, 1
      %s27 = ssub.s32 %s19, %s26
      %p28 = scmp.eq.s32.totalorder %s27, 0
      %s30 = sadd.s32 %s29, 1
      %s31 = scalar_select %p28, %s29, %s30
      %p34 = pneg %p28
      %p35 = scmp.eq.s32.totalorder %s19, 1
      %p36 = por %p34, %p35
      %p37 = scmp.ne.s32.totalorder %s29, %s32
      %p38 = scmp.eq.s32.totalorder %s19, 0
      %p39 = por %p37, %p38
      %p40 = scmp.ne.s32.totalorder %s29, %s32
      %p41 = scmp.eq.s32.totalorder %s24, 1
      %p42 = por %p40, %p41
      %p43 = scmp.ne.s32.totalorder %s32, %s33
      %p44 = scmp.eq.s32.totalorder %s24, 0
      %p45 = por %p43, %p44
      %p46 = scmp.ne.s32.totalorder %s32, %s33
      %p47 = scmp.eq.s32.totalorder %s25, 1
      %p48 = por %p46, %p47
      %p50 = scmp.ne.s32.totalorder %s33, %s49
      %p51 = scmp.eq.s32.totalorder %s25, 0
      %p52 = por %p50, %p51
      %s54 = sadd.s32 %s53, 1
      %p57 = scmp.eq.s32.totalorder %s19, 1
      %p58 = scmp.ne.s32.totalorder %s53, %s55
      %p59 = scmp.eq.s32.totalorder %s19, 0
      %p60 = por %p58, %p59
      %p61 = scmp.ne.s32.totalorder %s53, %s55
      %p62 = scmp.eq.s32.totalorder %s24, 1
      %p63 = por %p61, %p62
      %p64 = scmp.ne.s32.totalorder %s55, %s56
      %p65 = scmp.eq.s32.totalorder %s24, 0
      %p66 = por %p64, %p65
      %p67 = scmp.ne.s32.totalorder %s55, %s56
      %p68 = scmp.eq.s32.totalorder %s25, 1
      %p69 = por %p67, %p68
      %p71 = scmp.ne.s32.totalorder %s56, %s70
      %p72 = scmp.eq.s32.totalorder %s25, 0
      %p73 = por %p71, %p72
      %s75 = sadd.s32 %s74, 1
      %p78 = scmp.eq.s32.totalorder %s19, 1
      %p79 = scmp.ne.s32.totalorder %s74, %s76
      %p80 = scmp.eq.s32.totalorder %s19, 0
      %p81 = por %p79, %p80
      %p82 = scmp.ne.s32.totalorder %s74, %s76
      %p83 = scmp.eq.s32.totalorder %s24, 1
      %p84 = por %p82, %p83
      %p85 = scmp.ne.s32.totalorder %s76, %s77
      %p86 = scmp.eq.s32.totalorder %s24, 0
      %p87 = por %p85, %p86
      %p88 = scmp.ne.s32.totalorder %s76, %s77
      %p89 = scmp.eq.s32.totalorder %s25, 1
      %p90 = por %p88, %p89
      %p92 = scmp.ne.s32.totalorder %s77, %s91
      %p93 = scmp.eq.s32.totalorder %s25, 0
      %p94 = por %p92, %p93
      %s96 = sadd.s32 %s95, 1
      %p99 = scmp.eq.s32.totalorder %s19, 1
      %p100 = scmp.ne.s32.totalorder %s95, %s97
      %p101 = scmp.eq.s32.totalorder %s19, 0
      %p102 = por %p100, %p101
      %p103 = scmp.ne.s32.totalorder %s95, %s97
      %p104 = scmp.eq.s32.totalorder %s24, 1
      %p105 = por %p103, %p104
      %p106 = scmp.ne.s32.totalorder %s97, %s98
      %p107 = scmp.eq.s32.totalorder %s24, 0
      %p108 = por %p106, %p107
      %p109 = scmp.ne.s32.totalorder %s97, %s98
      %p110 = scmp.eq.s32.totalorder %s25, 1
      %p111 = por %p109, %p110
      %p113 = scmp.ne.s32.totalorder %s98, %s112
      %p114 = scmp.eq.s32.totalorder %s25, 0
      %p115 = por %p113, %p114
      %s117 = sadd.s32 %s116, 1
      %p120 = scmp.eq.s32.totalorder %s19, 1
      %p121 = scmp.ne.s32.totalorder %s116, %s118
      %p122 = scmp.eq.s32.totalorder %s19, 0
      %p123 = por %p121, %p122
      %p124 = scmp.ne.s32.totalorder %s116, %s118
      %p125 = scmp.eq.s32.totalorder %s24, 1
      %p126 = por %p124, %p125
      %p127 = scmp.ne.s32.totalorder %s118, %s119
      %p128 = scmp.eq.s32.totalorder %s24, 0
      %p129 = por %p127, %p128
      %p130 = scmp.ne.s32.totalorder %s118, %s119
      %p131 = scmp.eq.s32.totalorder %s25, 1
      %p132 = por %p130, %p131
      %p134 = scmp.ne.s32.totalorder %s119, %s133
      %p135 = scmp.eq.s32.totalorder %s25, 0
      %p136 = por %p134, %p135
      %s138 = sadd.s32 %s137, 1
      %p141 = scmp.eq.s32.totalorder %s19, 1
      %p142 = scmp.ne.s32.totalorder %s137, %s139
      %p143 = scmp.eq.s32.totalorder %s19, 0
      %p144 = por %p142, %p143
      %p145 = scmp.ne.s32.totalorder %s137, %s139
      %p146 = scmp.eq.s32.totalorder %s24, 1
      %p147 = por %p145, %p146
      %p148 = scmp.ne.s32.totalorder %s139, %s140
      %p149 = scmp.eq.s32.totalorder %s24, 0
      %p150 = por %p148, %p149
      %p151 = scmp.ne.s32.totalorder %s139, %s140
      %p152 = scmp.eq.s32.totalorder %s25, 1
      %p153 = por %p151, %p152
      %p155 = scmp.ne.s32.totalorder %s140, %s154
      %p156 = scmp.eq.s32.totalorder %s25, 0
      %p157 = por %p155, %p156
      %s159 = sadd.s32 %s158, 1
      %p162 = scmp.eq.s32.totalorder %s19, 1
      %p163 = scmp.ne.s32.totalorder %s158, %s160
      %p164 = scmp.eq.s32.totalorder %s19, 0
      %p165 = por %p163, %p164
      %p166 = scmp.ne.s32.totalorder %s158, %s160
      %p167 = scmp.eq.s32.totalorder %s24, 1
      %p168 = por %p166, %p167
      %p169 = scmp.ne.s32.totalorder %s160, %s161
      %p170 = scmp.eq.s32.totalorder %s24, 0
      %p171 = por %p169, %p170
      %p172 = scmp.ne.s32.totalorder %s160, %s161
      %p173 = scmp.eq.s32.totalorder %s25, 1
      %p174 = por %p172, %p173
      %p176 = scmp.ne.s32.totalorder %s161, %s175
      %p177 = scmp.eq.s32.totalorder %s25, 0
      %p178 = por %p176, %p177
      %s180 = sadd.s32 %s179, 1
      %p183 = scmp.eq.s32.totalorder %s19, 1
      %p184 = scmp.ne.s32.totalorder %s179, %s181
      %p185 = scmp.eq.s32.totalorder %s19, 0
      %p186 = por %p184, %p185
      %p187 = scmp.ne.s32.totalorder %s179, %s181
      %p188 = scmp.eq.s32.totalorder %s24, 1
      %p189 = por %p187, %p188
      %p190 = scmp.ne.s32.totalorder %s181, %s182
      %p191 = scmp.eq.s32.totalorder %s24, 0
      %p192 = por %p190, %p191
      %p193 = scmp.ne.s32.totalorder %s181, %s182
      %p194 = scmp.eq.s32.totalorder %s25, 1
      %p195 = por %p193, %p194
      %p197 = scmp.ne.s32.totalorder %s182, %s196
      %p198 = scmp.eq.s32.totalorder %s25, 0
      %p199 = por %p197, %p198
      %s201 = sadd.s32 %s200, 1
      %p204 = scmp.eq.s32.totalorder %s19, 1
      %p205 = scmp.ne.s32.totalorder %s200, %s202
      %p206 = scmp.eq.s32.totalorder %s19, 0
      %p207 = por %p205, %p206
      %p208 = scmp.ne.s32.totalorder %s200, %s202
      %p209 = scmp.eq.s32.totalorder %s24, 1
      %p210 = por %p208, %p209
      %p211 = scmp.ne.s32.totalorder %s202, %s203
      %p212 = scmp.eq.s32.totalorder %s24, 0
      %p213 = por %p211, %p212
      %p214 = scmp.ne.s32.totalorder %s202, %s203
      %p215 = scmp.eq.s32.totalorder %s25, 1
      %p216 = por %p214, %p215
      %p218 = scmp.ne.s32.totalorder %s203, %s217
      %p219 = scmp.eq.s32.totalorder %s25, 0
      %p220 = por %p218, %p219
      %s221 = ssub.s32 %s19, %s26
      %p222 = scmp.eq.s32.totalorder %s221, 0
      %s224 = sadd.s32 %s223, 1
      %s225 = scalar_select %p222, %s223, %s224
      %p228 = pneg %p222
      %p229 = scmp.eq.s32.totalorder %s19, 1
      %p230 = por %p228, %p229
      %p231 = scmp.ne.s32.totalorder %s223, %s226
      %p232 = scmp.eq.s32.totalorder %s19, 0
      %p233 = por %p231, %p232
      %p234 = scmp.ne.s32.totalorder %s223, %s226
      %p235 = scmp.eq.s32.totalorder %s24, 1
      %p236 = por %p234, %p235
      %p237 = scmp.ne.s32.totalorder %s226, %s227
      %p238 = scmp.eq.s32.totalorder %s24, 0
      %p239 = por %p237, %p238
      %p240 = scmp.ne.s32.totalorder %s226, %s227
      %p241 = scmp.eq.s32.totalorder %s25, 1
      %p242 = por %p240, %p241
      %p244 = scmp.ne.s32.totalorder %s227, %s243
      %p245 = scmp.eq.s32.totalorder %s25, 0
      %p246 = por %p244, %p245
      %p247 = scmp.le.s32.totalorder 1, %s19
      %p248 = scmp.lt.s32.totalorder %s19, 3
      %p249 = pnand %p247, %p248
      %p250 = pneg %p249
      // Predicated region
      $region9: #{tpu_custom_call.1} parent=5 // pred_check
        _
      $region10: #{tpu_custom_call.1} parent=5 // pred_check_branch
        %252 = sbr.rel (%p249) target = $region12
      $region11: #{tpu_custom_call.1} parent=5 // pred_region
        %s253 = ssub.s32 %s19, 1
        // Predicated region
        $region13: #{tpu_custom_call.1} parent=11 // pred_check
          %p254 = pneg %p66
        $region14: #{tpu_custom_call.1} parent=11 // pred_check_branch
          %256 = sbr.rel (%p254) target = $region16
        $region15: #{tpu_custom_call.1} parent=11 // pred_region
          _
        $region16: #{tpu_custom_call.1} parent=11 // pred_fallthru
          _
        // Predicated region
        $region17: #{tpu_custom_call.1} parent=11 // pred_check
          %p257 = pneg %p87
        $region18: #{tpu_custom_call.1} parent=11 // pred_check_branch
          %259 = sbr.rel (%p257) target = $region20
        $region19: #{tpu_custom_call.1} parent=11 // pred_region
          _
        $region20: #{tpu_custom_call.1} parent=11 // pred_fallthru
          _
        // Predicated region
        $region21: #{tpu_custom_call.1} parent=11 // pred_check
          %p260 = pneg %p108
        $region22: #{tpu_custom_call.1} parent=11 // pred_check_branch
          %262 = sbr.rel (%p260) target = $region24
        $region23: #{tpu_custom_call.1} parent=11 // pred_region
          _
        $region24: #{tpu_custom_call.1} parent=11 // pred_fallthru
          _
        // Predicated region
        $region25: #{tpu_custom_call.1} parent=11 // pred_check
          %p263 = pneg %p129
        $region26: #{tpu_custom_call.1} parent=11 // pred_check_branch
          %265 = sbr.rel (%p263) target = $region28
        $region27: #{tpu_custom_call.1} parent=11 // pred_region
          _
        $region28: #{tpu_custom_call.1} parent=11 // pred_fallthru
          _
        // Predicated region
        $region29: #{tpu_custom_call.1} parent=11 // pred_check
          %p266 = pneg %p150
        $region30: #{tpu_custom_call.1} parent=11 // pred_check_branch
          %268 = sbr.rel (%p266) target = $region32
        $region31: #{tpu_custom_call.1} parent=11 // pred_region
          _
        $region32: #{tpu_custom_call.1} parent=11 // pred_fallthru
          _
        // Predicated region
        $region33: #{tpu_custom_call.1} parent=11 // pred_check
          %p269 = pneg %p171
        $region34: #{tpu_custom_call.1} parent=11 // pred_check_branch
          %271 = sbr.rel (%p269) target = $region36
        $region35: #{tpu_custom_call.1} parent=11 // pred_region
          _
        $region36: #{tpu_custom_call.1} parent=11 // pred_fallthru
          _
        // Predicated region
        $region37: #{tpu_custom_call.1} parent=11 // pred_check
          %p272 = pneg %p192
        $region38: #{tpu_custom_call.1} parent=11 // pred_check_branch
          %274 = sbr.rel (%p272) target = $region40
        $region39: #{tpu_custom_call.1} parent=11 // pred_region
          _
        $region40: #{tpu_custom_call.1} parent=11 // pred_fallthru
          _
        // Predicated region
        $region41: #{tpu_custom_call.1} parent=11 // pred_check
          %p275 = pneg %p213
        $region42: #{tpu_custom_call.1} parent=11 // pred_check_branch
          %277 = sbr.rel (%p275) target = $region44
        $region43: #{tpu_custom_call.1} parent=11 // pred_region
          %279 = vsyncadd [#allocation4], 0
          %s281 = sshll.u32 %s8, 4
          %s282 = int_to_ptr.vmem [resolvable:$true] %s281
          %284 = dma.vmem_to_smem %s282, 16, [#allocation2], [#allocation4]
        $region44: #{tpu_custom_call.1} parent=11 // pred_fallthru
          _
      $region12: #{tpu_custom_call.1} parent=5 // pred_fallthru
        _
      %p285 = scmp.lt.s32.totalorder %s19, 2
      // Predicated region
      $region45: #{tpu_custom_call.1} parent=5 // pred_check
        %p286 = pneg %p285
      $region46: #{tpu_custom_call.1} parent=5 // pred_check_branch
        %288 = sbr.rel (%p286) target = $region48
      $region47: #{tpu_custom_call.1} parent=5 // pred_region
        // Predicated region
        $region49: #{tpu_custom_call.1} parent=47 // pred_check
          %p289 = pneg %p39
        $region50: #{tpu_custom_call.1} parent=47 // pred_check_branch
          %291 = sbr.rel (%p289) target = $region52
        $region51: #{tpu_custom_call.1} parent=47 // pred_region
          %p292 = scmp.lt.s32.totalorder %s19, 1
          %s293 = scalar_select %p292, %s19, 1
          %s294 = smul.addr %s293, 4
          %s295 = scalar_lea.vmem %s0, %s294
        $region52: #{tpu_custom_call.1} parent=47 // pred_fallthru
          _
      $region48: #{tpu_custom_call.1} parent=5 // pred_fallthru
        _
      %p296 = scmp.le.s32.totalorder 1, %s19
      %p297 = scmp.lt.s32.totalorder %s19, 3
      %p298 = pnand %p296, %p297
      %p299 = pneg %p298
      // Predicated region
      $region53: #{tpu_custom_call.1} parent=5 // pred_check
        _
      $region54: #{tpu_custom_call.1} parent=5 // pred_check_branch
        %301 = sbr.rel (%p298) target = $region56
      $region55: #{tpu_custom_call.1} parent=5 // pred_region
        %s302 = ssub.s32 %s19, 1
        // Predicated region
        $region57: #{tpu_custom_call.1} parent=55 // pred_check
          %p303 = pneg %p213
        $region58: #{tpu_custom_call.1} parent=55 // pred_check_branch
          %305 = sbr.rel (%p303) target = $region60
        $region59: #{tpu_custom_call.1} parent=55 // pred_region
          %307 = dma.done [#allocation4], 16
        $region60: #{tpu_custom_call.1} parent=55 // pred_fallthru
          _
        %308 = sfence
        %p309 = scmp.lt.s32.totalorder %s24, 1
        %s310 = scalar_select %p309, %s24, 1
        %s311 = smul.addr %s310, 4
        %s312 = scalar_lea.vmem %s0, %s311
        %p313 = pneg %p45
        %p314 = pneg %p42
        %p315 = pneg %p66
        %p316 = pneg %p63
        %p317 = pneg %p87
        %p318 = pneg %p84
        %p319 = pneg %p108
        %p320 = pneg %p105
        %p321 = pneg %p129
        %p322 = pneg %p126
        %p323 = pneg %p150
        %p324 = pneg %p147
        %p325 = pneg %p171
        %p326 = pneg %p168
        %p327 = pneg %p192
        %p328 = pneg %p189
        %p329 = pneg %p213
        %p330 = pneg %p210
        %p331 = pneg %p239
        %p332 = pneg %p236
        %s333 = sand.u32 %s226, 1
        %s334 = scalar_lea.sflag [#allocation3], %s333
        %s335 = sand.u32 %s226, 1
        %s336 = smul.addr %s335, 8
        %s337 = scalar_lea.vmem [#allocation5], %s336
        %p338 = scmp.lt.s32.totalorder %s24, 1
        %s339 = scalar_select %p338, %s24, 1
        %s340 = smul.addr %s339, 4
        %s341 = scalar_lea.vmem %s0, %s340
        %v344 = vld [vmem:[%s341] sm:$0xf]
        %v345 = vld [vmem:[%s1] sm:$0xf]
        %v346 = vld [vmem:[%s1 + $0x4] sm:$0xf]
        %v347 = vld [vmem:[%s1 + $0x8] sm:$0xf]
        %v348 = vld [vmem:[%s1 + $0xc] sm:$0xf]
        %v349 = vld [vmem:[%s2] sm:$0x1]
        %v351 = vperm.slane %v349, 0
        %v357 = vunpack.c.l.b16 %v345
        %v358 = vunpack.c.l.b16 %v346
        %v359 = vunpack.c.l.b16 %v347
        %v360 = vunpack.c.l.b16 %v348
        %v361 = vpack.c.b16 %v358, %v357
        %v362 = vpack.c.b16 %v360, %v359
        %vm365 = vcmask 261120
        %v367 = vsel %vm365, %v344, 0
        %369 = vmatpush.bf16.msra.mxu0 0
        %370 = vmatpush.bf16.msra.mxu0 0
        %371 = vmatpush.bf16.msra.mxu0 0
        %372 = vmatpush.bf16.msra.mxu0 0
        %373 = vmatpush.bf16.msra.mxu0 0
        %374 = vmatpush.bf16.msra.mxu0 0
        %375 = vmatpush.bf16.msra.mxu0 %v362
        %376 = vmatpush.bf16.msra.mxu0 %v361
        %377 = vmatmul.bf16.gmra.mxu0 %v367
        %v378 = vpop.f32.mrf.mxu0
        %v379 = vadd.f32 %v351, %v378
        %v380 = vpop.f32.mrf.mxu0
        %381 = vdwg.mxu0
        %v382 = vpack.c.bf16 %v379, %v379
        %v383 = vld [vmem:[%s3] sm:$0xf]
        %v384 = vld [vmem:[%s3 + $0x4] sm:$0xf]
        %v385 = vld [vmem:[%s3 + $0x8] sm:$0xf]
        %v386 = vld [vmem:[%s3 + $0xc] sm:$0xf]
        %v387 = vld [vmem:[%s3 + $0x10] sm:$0xf]
        %v388 = vld [vmem:[%s3 + $0x14] sm:$0xf]
        %v389 = vld [vmem:[%s3 + $0x18] sm:$0xf]
        %v390 = vld [vmem:[%s3 + $0x1c] sm:$0xf]
        %v391 = vld [vmem:[%s4] sm:$0x1]
        %v393 = vperm.slane %v391, 0
        %v403 = vunpack.c.l.b16 %v383
        %v404 = vunpack.c.l.b16 %v384
        %v405 = vunpack.c.l.b16 %v385
        %v406 = vunpack.c.l.b16 %v386
        %v407 = vunpack.c.l.b16 %v387
        %v408 = vunpack.c.l.b16 %v388
        %v409 = vunpack.c.l.b16 %v389
        %v410 = vunpack.c.l.b16 %v390
        %v411 = vpack.c.b16 %v404, %v403
        %v412 = vpack.c.b16 %v406, %v405
        %v413 = vpack.c.b16 %v408, %v407
        %v414 = vpack.c.b16 %v410, %v409
        %vm419 = vcmask 523264
        %v421 = vsel %vm419, %v382, 0
        %423 = vmatpush.bf16.msra.mxu0 0
        %424 = vmatpush.bf16.msra.mxu0 0
        %425 = vmatpush.bf16.msra.mxu0 0
        %426 = vmatpush.bf16.msra.mxu0 0
        %427 = vmatpush.bf16.msra.mxu0 %v414
        %428 = vmatpush.bf16.msra.mxu0 %v413
        %429 = vmatpush.bf16.msra.mxu0 %v412
        %430 = vmatpush.bf16.msra.mxu0 %v411
        %431 = vmatmul.bf16.gmra.mxu0 %v421
        %v432 = vpop.f32.mrf.mxu0
        %v433 = vadd.f32 %v393, %v432
        %v434 = vpop.f32.mrf.mxu0
        %435 = vdwg.mxu0
        %v436 = vld [vmem:[%s6] sm:$0xff]
        %438 = vset.pattern.permute.xlu0 0
        %439 = vperm.xlu0 %438, %v436
        %v440 = vpop.permute.xlu0 %439
        %v442 = vmul.f32 %v433, %v440
        %v443 = vld [vmem:[%s7] sm:$0xff]
        %445 = vset.pattern.permute.xlu0 0
        %446 = vperm.xlu0 %445, %v443
        %v447 = vpop.permute.xlu0 %446
        %v449 = vadd.f32 %v442, %v447
        %v450 = vxor.u32 %v433, 2147483648
        %v451 = vmul.f32 %v450, 1.442695
        %v452 = vpow.pop %v451
        %v453 = vadd.f32 %v452, 1.0
        %v454 = vrcp.pop %v453
        %v455 = vmul.f32 %v453, %v454
        %v456 = vsub.f32 1.0, %v455
        %v457 = vmul.f32 %v454, %v456
        %v458 = vadd.f32 %v454, %v457
        %vm459 = vweird.f32 %v453
        %vm460 = vweird.f32 %v454
        %vm461 = vmor %vm459, %vm460
        %v462 = vsel %vm461, %v454, %v458
        %v463 = vand.u32 2147483647, %v453
        %vm464 = vcmp.eq.f32.partialorder %v463, 8.507059e+37
        %v465 = vand.u32 %v453, 2147483648
        %v466 = vor.u32 1.1754944e-38, %v465
        %v467 = vsel %vm464, %v466, %v462
        %v468 = vmul.f32 1.0, %v467
        %vm469 = vcmask 64512
        %v470 = vsel %vm469, %v449, -inf
        %471 = vmax.xlane.f32.xlu0 %v470
        %v472 = vpop.xlane.xlu0 %471
        %v473 = vsub.f32 %v449, %v472
        %v474 = vmul.f32 %v473, 1.442695
        %v475 = vpow.pop %v474
        %v476 = vsel %vm469, %v475, 0.0
        %477 = vadd.xlane.f32.xlu0 %v476
        %v478 = vpop.xlane.xlu0 %477
        %v479 = vrcp.pop %v478
        %v480 = vmul.f32 %v475, %v479
        %482 = vset.pattern.permute.xlu0 32
        %483 = vperm.xlu0 %482, %v468
        %v484 = vpop.permute.xlu0 %483
        %v486 = vmul.f32 %v480, %v484
        %v487 = vadd.f32 %v486, 0.0
        %v488 = vpack.c.bf16 %v486, %v486
        %vm489 = vcmask 130112
        %v490 = vsel %vm489, %v449, -inf
        %491 = vmax.xlane.f32.xlu0 %v490
        %v492 = vpop.xlane.xlu0 %491
        %v493 = vsub.f32 %v449, %v492
        %v494 = vmul.f32 %v493, 1.442695
        %v495 = vpow.pop %v494
        %497 = vrot.lane.b32.xlu0 %v495, 120
        %v498 = vpop.permute.xlu0 %497
        %v500 = vsel %vm469, %v498, 0.0
        %501 = vadd.xlane.f32.xlu0 %v500
        %v502 = vpop.xlane.xlu0 %501
        %v503 = vrcp.pop %v502
        %v504 = vmul.f32 %v495, %v503
        %505 = vset.pattern.permute.xlu0 33
        %506 = vperm.xlu0 %505, %v468
        %v507 = vpop.permute.xlu0 %506
        %v509 = vmul.f32 %v504, %v507
        %511 = vrot.lane.b32.xlu0 %v509, 120
        %v512 = vpop.permute.xlu0 %511
        %v514 = vadd.f32 %v487, %v512
        %v515 = vpack.c.bf16 %v509, %v509
        %vm516 = vcmask 195712
        %v517 = vsel %vm516, %v449, -inf
        %518 = vmax.xlane.f32.xlu0 %v517
        %v519 = vpop.xlane.xlu0 %518
        %v520 = vsub.f32 %v449, %v519
        %v521 = vmul.f32 %v520, 1.442695
        %v522 = vpow.pop %v521
        %524 = vrot.lane.b32.xlu0 %v522, 112
        %v525 = vpop.permute.xlu0 %524
        %v527 = vsel %vm469, %v525, 0.0
        %528 = vadd.xlane.f32.xlu0 %v527
        %v529 = vpop.xlane.xlu0 %528
        %v530 = vrcp.pop %v529
        %v531 = vmul.f32 %v522, %v530
        %532 = vset.pattern.permute.xlu0 34
        %533 = vperm.xlu0 %532, %v468
        %v534 = vpop.permute.xlu0 %533
        %v536 = vmul.f32 %v531, %v534
        %538 = vrot.lane.b32.xlu0 %v536, 112
        %v539 = vpop.permute.xlu0 %538
        %v541 = vadd.f32 %v514, %v539
        %v542 = vpack.c.bf16 %v536, %v536
        %vm543 = vcmask 261312
        %v544 = vsel %vm543, %v449, -inf
        %545 = vmax.xlane.f32.xlu0 %v544
        %v546 = vpop.xlane.xlu0 %545
        %v547 = vsub.f32 %v449, %v546
        %v548 = vmul.f32 %v547, 1.442695
        %v549 = vpow.pop %v548
        %551 = vrot.lane.b32.xlu0 %v549, 104
        %v552 = vpop.permute.xlu0 %551
        %v554 = vsel %vm469, %v552, 0.0
        %555 = vadd.xlane.f32.xlu0 %v554
        %v556 = vpop.xlane.xlu0 %555
        %v557 = vrcp.pop %v556
        %v558 = vmul.f32 %v549, %v557
        %559 = vset.pattern.permute.xlu0 35
        %560 = vperm.xlu0 %559, %v468
        %v561 = vpop.permute.xlu0 %560
        %v563 = vmul.f32 %v558, %v561
        %565 = vrot.lane.b32.xlu0 %v563, 104
        %v566 = vpop.permute.xlu0 %565
        %v568 = vadd.f32 %v541, %v566
        %v569 = vpack.c.bf16 %v563, %v563
        %571 = vrot.lane.b32.xlu0 %v515, 120
        %v572 = vpop.permute.xlu0 %571
        %574 = vxpose.xlu0.c.b16.start [1/8] %v572, 128
        %575 = vxpose.xlu0.c.b16.cont [2/8] 0, 128
        %576 = vxpose.xlu0.c.b16.cont [3/8] 0, 128
        %577 = vxpose.xlu0.c.b16.cont [4/8] 0, 128
        %578 = vxpose.xlu0.c.b16.cont [5/8] 0, 128
        %579 = vxpose.xlu0.c.b16.cont [6/8] 0, 128
        %580 = vxpose.xlu0.c.b16.cont [7/8] 0, 128
        %581 = vxpose.xlu0.c.b16.end [8/8] 0, 128
        %v582 = vpop.trf.xlu0
        %v583 = vpop.trf.xlu0
        %v584 = vpop.trf.xlu0
        %v585 = vpop.trf.xlu0
        %v586 = vpop.trf.xlu0
        %v587 = vpop.trf.xlu0
        %v588 = vpop.trf.xlu0
        %v589 = vpop.trf.xlu0
        %v591 = vunpack.c.l.b16 %v382
        %v592 = vpack.c.b16 %v591, %v591
        %593 = vrot.lane.b32.xlu0 %v592, 112
        %v594 = vpop.permute.xlu0 %593
        %v596 = vsel %vm469, %v582, 0
        %vm598 = vcmask 1043456
        %v600 = vsel %vm598, %v594, 0
        %602 = vmatpush.bf16.msra.mxu0 0
        %603 = vmatpush.bf16.msra.mxu0 0
        %604 = vmatpush.bf16.msra.mxu0 0
        %605 = vmatpush.bf16.msra.mxu0 0
        %606 = vmatpush.bf16.msra.mxu0 0
        %607 = vmatpush.bf16.msra.mxu0 0
        %608 = vmatpush.bf16.msra.mxu0 0
        %609 = vmatpush.bf16.msra.mxu0 %v600
        %610 = vmatmul.bf16.gmra.mxu0 %v596
        %v611 = vpop.f32.mrf.mxu0
        %v612 = vadd.f32 0.0, %v611
        %v613 = vpop.f32.mrf.mxu0
        %614 = vdwg.mxu0
        %615 = vxpose.xlu0.c.b16.start [1/8] %v488, 128
        %616 = vxpose.xlu0.c.b16.cont [2/8] 0, 128
        %617 = vxpose.xlu0.c.b16.cont [3/8] 0, 128
        %618 = vxpose.xlu0.c.b16.cont [4/8] 0, 128
        %619 = vxpose.xlu0.c.b16.cont [5/8] 0, 128
        %620 = vxpose.xlu0.c.b16.cont [6/8] 0, 128
        %621 = vxpose.xlu0.c.b16.cont [7/8] 0, 128
        %622 = vxpose.xlu0.c.b16.end [8/8] 0, 128
        %v623 = vpop.trf.xlu0
        %v624 = vpop.trf.xlu0
        %v625 = vpop.trf.xlu0
        %v626 = vpop.trf.xlu0
        %v627 = vpop.trf.xlu0
        %v628 = vpop.trf.xlu0
        %v629 = vpop.trf.xlu0
        %v630 = vpop.trf.xlu0
        %v632 = vsel %vm469, %v623, 0
        %v634 = vsel %vm598, %v382, 0
        %636 = vmatpush.bf16.msra.mxu0 0
        %637 = vmatpush.bf16.msra.mxu0 0
        %638 = vmatpush.bf16.msra.mxu0 0
        %639 = vmatpush.bf16.msra.mxu0 0
        %640 = vmatpush.bf16.msra.mxu0 0
        %641 = vmatpush.bf16.msra.mxu0 0
        %642 = vmatpush.bf16.msra.mxu0 0
        %643 = vmatpush.bf16.msra.mxu0 %v634
        %644 = vmatmul.bf16.gmra.mxu0 %v632
        %v645 = vpop.f32.mrf.mxu0
        %v646 = vadd.f32 %v612, %v645
        %v647 = vpop.f32.mrf.mxu0
        %648 = vdwg.mxu0
        %650 = vrot.lane.b32.xlu0 %v542, 112
        %v651 = vpop.permute.xlu0 %650
        %653 = vxpose.xlu0.c.b16.start [1/8] %v651, 128
        %654 = vxpose.xlu0.c.b16.cont [2/8] 0, 128
        %655 = vxpose.xlu0.c.b16.cont [3/8] 0, 128
        %656 = vxpose.xlu0.c.b16.cont [4/8] 0, 128
        %657 = vxpose.xlu0.c.b16.cont [5/8] 0, 128
        %658 = vxpose.xlu0.c.b16.cont [6/8] 0, 128
        %659 = vxpose.xlu0.c.b16.cont [7/8] 0, 128
        %660 = vxpose.xlu0.c.b16.end [8/8] 0, 128
        %v661 = vpop.trf.xlu0
        %v662 = vpop.trf.xlu0
        %v663 = vpop.trf.xlu0
        %v664 = vpop.trf.xlu0
        %v665 = vpop.trf.xlu0
        %v666 = vpop.trf.xlu0
        %v667 = vpop.trf.xlu0
        %v668 = vpop.trf.xlu0
        %669 = vrot.lane.b32.xlu0 %v592, 96
        %v670 = vpop.permute.xlu0 %669
        %v672 = vsel %vm469, %v661, 0
        %v675 = vsel %vm598, %v670, 0
        %677 = vmatpush.bf16.msra.mxu0 0
        %678 = vmatpush.bf16.msra.mxu0 0
        %679 = vmatpush.bf16.msra.mxu0 0
        %680 = vmatpush.bf16.msra.mxu0 0
        %681 = vmatpush.bf16.msra.mxu0 0
        %682 = vmatpush.bf16.msra.mxu0 0
        %683 = vmatpush.bf16.msra.mxu0 0
        %684 = vmatpush.bf16.msra.mxu0 %v675
        %685 = vmatmul.bf16.gmra.mxu0 %v672
        %v686 = vpop.f32.mrf.mxu0
        %v687 = vadd.f32 0.0, %v686
        %v688 = vpop.f32.mrf.mxu0
        %689 = vdwg.mxu0
        %v690 = vadd.f32 %v646, %v687
        %692 = vrot.lane.b32.xlu0 %v569, 104
        %v693 = vpop.permute.xlu0 %692
        %695 = vxpose.xlu0.c.b16.start [1/8] %v693, 128
        %696 = vxpose.xlu0.c.b16.cont [2/8] 0, 128
        %697 = vxpose.xlu0.c.b16.cont [3/8] 0, 128
        %698 = vxpose.xlu0.c.b16.cont [4/8] 0, 128
        %699 = vxpose.xlu0.c.b16.cont [5/8] 0, 128
        %700 = vxpose.xlu0.c.b16.cont [6/8] 0, 128
        %701 = vxpose.xlu0.c.b16.cont [7/8] 0, 128
        %702 = vxpose.xlu0.c.b16.end [8/8] 0, 128
        %v703 = vpop.trf.xlu0
        %v704 = vpop.trf.xlu0
        %v705 = vpop.trf.xlu0
        %v706 = vpop.trf.xlu0
        %v707 = vpop.trf.xlu0
        %v708 = vpop.trf.xlu0
        %v709 = vpop.trf.xlu0
        %v710 = vpop.trf.xlu0
        %711 = vrot.lane.b32.xlu0 %v592, 80
        %v712 = vpop.permute.xlu0 %711
        %v714 = vsel %vm469, %v703, 0
        %v717 = vsel %vm598, %v712, 0
        %719 = vmatpush.bf16.msra.mxu0 0
        %720 = vmatpush.bf16.msra.mxu0 0
        %721 = vmatpush.bf16.msra.mxu0 0
        %722 = vmatpush.bf16.msra.mxu0 0
        %723 = vmatpush.bf16.msra.mxu0 0
        %724 = vmatpush.bf16.msra.mxu0 0
        %725 = vmatpush.bf16.msra.mxu0 0
        %726 = vmatpush.bf16.msra.mxu0 %v717
        %727 = vmatmul.bf16.gmra.mxu0 %v714
        %v728 = vpop.f32.mrf.mxu0
        %v729 = vadd.f32 0.0, %v728
        %v730 = vpop.f32.mrf.mxu0
        %731 = vdwg.mxu0
        %v732 = vadd.f32 %v690, %v729
        %v733 = vpack.c.bf16 %v568, %v568
        %734 = vxpose.xlu0.c.b16.start [1/8] %v733, 128
        %735 = vxpose.xlu0.c.b16.cont [2/8] 0, 128
        %736 = vxpose.xlu0.c.b16.cont [3/8] 0, 128
        %737 = vxpose.xlu0.c.b16.cont [4/8] 0, 128
        %738 = vxpose.xlu0.c.b16.cont [5/8] 0, 128
        %739 = vxpose.xlu0.c.b16.cont [6/8] 0, 128
        %740 = vxpose.xlu0.c.b16.cont [7/8] 0, 128
        %741 = vxpose.xlu0.c.b16.end [8/8] 0, 128
        %v742 = vpop.trf.xlu0
        %v743 = vpop.trf.xlu0
        %v744 = vpop.trf.xlu0
        %v745 = vpop.trf.xlu0
        %v746 = vpop.trf.xlu0
        %v747 = vpop.trf.xlu0
        %v748 = vpop.trf.xlu0
        %v749 = vpop.trf.xlu0
        %v751 = vsel %vm469, %v742, 0
        %v754 = vsel %vm598, 1065369472, 0
        %756 = vmatpush.bf16.msra.mxu0 0
        %757 = vmatpush.bf16.msra.mxu0 0
        %758 = vmatpush.bf16.msra.mxu0 0
        %759 = vmatpush.bf16.msra.mxu0 0
        %760 = vmatpush.bf16.msra.mxu0 0
        %761 = vmatpush.bf16.msra.mxu0 0
        %762 = vmatpush.bf16.msra.mxu0 0
        %763 = vmatpush.bf16.msra.mxu0 %v754
        %764 = vmatmul.bf16.gmra.mxu0 %v751
        %v765 = vpop.f32.mrf.mxu0
        %v766 = vadd.f32 0.0, %v765
        %v767 = vpop.f32.mrf.mxu0
        %768 = vdwg.mxu0
        %v769 = vld [vmem:[%s5] sm:$0xff]
        %771 = vset.pattern.permute.xlu0 0
        %772 = vperm.xlu0 %771, %v766
        %v773 = vpop.permute.xlu0 %772
        %v775 = vmul.f32 %v773, %v769
        %v776 = vsub.f32 %v732, %v775
        %v777 = vand.u32 2147483647, %v776
        %vm778 = vcmask 130048
        %v779 = vsel %vm778, %v777, 0.0
        %780 = vadd.xlane.f32.xlu0 %v779
        %v781 = vpop.xlane.xlu0 %780
        %v782 = vmax.f32 %v781, 1e-12
        %v783 = vrcp.pop %v782
        %v784 = vmul.f32 %v776, %v783
        %s785 = sld [smem:[#allocation2]]
        %v786 = vstv %s785
        %v787 = vmul.f32 %v784, %v786
        %s788 = sld [smem:[#allocation2 + $0x1]]
        %v789 = vstv %s788
        %v790 = vadd.f32 %v787, %v789
        %791 = vst.msk [vmem:[%s337] sm:$0xff] %vm778, %v790
        %s792 = sand.u32 %s226, 1
        %s793 = scalar_lea.sflag [#allocation3], %s792
        %s794 = sand.u32 %s226, 1
        %s795 = smul.addr %s794, 8
        %s796 = scalar_lea.vmem [#allocation5], %s795
        // Predicated region
        $region61: #{tpu_custom_call.1} parent=55 // pred_check
          %p797 = pneg %p236
        $region62: #{tpu_custom_call.1} parent=55 // pred_check_branch
          %799 = sbr.rel (%p797) target = $region64
        $region63: #{tpu_custom_call.1} parent=55 // pred_region
          %801 = vsyncadd %s793, 0
          %s802 = smul.addr %s24, 8
          %s803 = scalar_lea.hbm %s9, %s802
          %s805 = sshll.u32 %s796, 4
          %s806 = int_to_ptr.vmem [resolvable:$true] %s805
          %s807 = sshll.u32 %s803, 4
          %s808 = int_to_ptr.hbm [resolvable:$true] %s807
          %810 = dma.vmem_to_hbm [thread:$0]  %s806, 128, %s808, %s793
        $region64: #{tpu_custom_call.1} parent=55 // pred_fallthru
          _
      $region56: #{tpu_custom_call.1} parent=5 // pred_fallthru
        _
      %p811 = scmp.le.s32.totalorder 2, %s19
      // Predicated region
      $region65: #{tpu_custom_call.1} parent=5 // pred_check
        %p812 = pneg %p811
      $region66: #{tpu_custom_call.1} parent=5 // pred_check_branch
        %814 = sbr.rel (%p812) target = $region68
      $region67: #{tpu_custom_call.1} parent=5 // pred_region
        %s815 = ssub.s32 %s19, 2
        // Predicated region
        $region69: #{tpu_custom_call.1} parent=67 // pred_check
          %p816 = pneg %p242
        $region70: #{tpu_custom_call.1} parent=67 // pred_check_branch
          %818 = sbr.rel (%p816) target = $region72
        $region71: #{tpu_custom_call.1} parent=67 // pred_region
          %s819 = sand.u32 %s227, 1
          %s820 = scalar_lea.sflag [#allocation3], %s819
          %s821 = sand.u32 %s227, 1
          %s822 = smul.addr %s821, 8
          %s823 = scalar_lea.vmem [#allocation5], %s822
          %825 = dma.done %s820, 128
        $region72: #{tpu_custom_call.1} parent=67 // pred_fallthru
          _
      $region68: #{tpu_custom_call.1} parent=5 // pred_fallthru
        _
    $region6: #{tpu_custom_call.1} parent=1 // loop_footer
      %s23 = sadd.s32 1, %s19
    $region7: #{tpu_custom_call.1} parent=1 // loop_footer_branch
      %18 = sbr.rel target = $region3
    $region8: #{tpu_custom_call.1} parent=1 // loop_exit
      _
    %826 = vsyncpa [#allocation3], 1
    %s827 = scalar_lea.sflag [#allocation3], 1
    %828 = vsyncpa %s827, 1
    %829 = vsyncpa [#allocation4], 1
    %s830 = scalar_lea.sflag [#allocation4], 1
    %831 = vsyncpa %s830, 1

</llo_original>
